<compile_context>
chip_gen: v7x
topology: tpu7x:2x2x1
jax: 0.10.0
libtpu: 0.0.40
codegen_flags: <defaults>
</compile_context>

<pallas_src>
import functools

import jax
import jax.numpy as jnp
from jax.experimental import pallas as pl
from jax.experimental.pallas import tpu as pltpu


# ----------------------------------------------------------------------------
# Pallas kernel
# ----------------------------------------------------------------------------
def _cs_block_kernel(xa_ref, xb_ref, wa_ref, wb_ref, b_ref, o_ref):
    """Fused concat + 1x1 conv + (folded) BN + ReLU over a token tile.

    xa_ref : (tM, Cin)   bf16 image-feature tokens
    xb_ref : (tM, Cin)   bf16 other-feature tokens
    wa_ref : (Cin, Cout) bf16 weight half for image features (BN folded)
    wb_ref : (Cin, Cout) bf16 weight half for other features (BN folded)
    b_ref  : (1, Cout)   f32 bias (BN folded)
    o_ref  : (tM, Cout)  f32 output
    """
    acc = jnp.dot(xa_ref[...], wa_ref[...], preferred_element_type=jnp.float32)
    acc = acc + jnp.dot(xb_ref[...], wb_ref[...],
                        preferred_element_type=jnp.float32)
    o_ref[...] = jnp.maximum(acc + b_ref[...], 0.0).astype(o_ref.dtype)


# ----------------------------------------------------------------------------
# Wrapper
# ----------------------------------------------------------------------------
def _choose_tile_m(m):
    """Largest power-of-two token tile that still yields >= 2 grid steps
    (so v7x's two TensorCores both get work), capped at 2048 rows."""
    for t in (2048, 1024, 512, 256, 128, 64, 32, 16, 8):
        if 2 * t <= m:
            return t
    return 8


def context_switching_block(image_feat, other_feat, w_img, w_other, b,
                            *, tile_m=None):
    """image_feat/other_feat: (N, Cin, H, W) f32 NCHW (PyTorch layout).
    w_img/w_other: (Cin, Cout) BN-folded weight halves; b: (Cout,) BN-folded bias.
    Returns (N, Cout, H, W) f32."""
    N, Cin, H, W = image_feat.shape
    Cout = w_img.shape[1]
    M = N * H * W

    # NCHW -> (tokens, C), bf16.  XLA fuses transpose + reshape + cast.
    def to_tokens(x):
        return jnp.transpose(x, (0, 2, 3, 1)).reshape(M, Cin).astype(jnp.bfloat16)

    xa = to_tokens(image_feat)
    xb = to_tokens(other_feat)

    if tile_m is None:
        tile_m = _choose_tile_m(M)
    n_blocks = pl.cdiv(M, tile_m)
    Mp = n_blocks * tile_m
    if Mp != M:                                    # pad tokens to a tile multiple
        pad = ((0, Mp - M), (0, 0))
        xa = jnp.pad(xa, pad)
        xb = jnp.pad(xb, pad)

    wa = w_img.astype(jnp.bfloat16)
    wb = w_other.astype(jnp.bfloat16)
    b2 = b.reshape(1, Cout).astype(jnp.float32)

    flops = 2 * 2 * Mp * Cin * Cout                # two matmuls
    bytes_accessed = (2 * Mp * Cin * 2             # bf16 activations
                      + 2 * Cin * Cout * 2         # bf16 weights
                      + Cout * 4                   # bias
                      + Mp * Cout * 4)             # f32 output

    out = pl.pallas_call(
        _cs_block_kernel,
        out_shape=jax.ShapeDtypeStruct((Mp, Cout), jnp.float32),
        grid=(n_blocks,),
        in_specs=[
            pl.BlockSpec((tile_m, Cin), lambda i: (i, 0)),
            pl.BlockSpec((tile_m, Cin), lambda i: (i, 0)),
            pl.BlockSpec((Cin, Cout), lambda i: (0, 0)),
            pl.BlockSpec((Cin, Cout), lambda i: (0, 0)),
            pl.BlockSpec((1, Cout), lambda i: (0, 0)),
        ],
        out_specs=pl.BlockSpec((tile_m, Cout), lambda i: (i, 0)),
        compiler_params=pltpu.CompilerParams(
            dimension_semantics=("parallel",)),
        cost_estimate=pl.CostEstimate(flops=flops, transcendentals=0,
                                      bytes_accessed=bytes_accessed),
    )(xa, xb, wa, wb, b2)

    out = out[:M].reshape(N, H, W, Cout)
    return jnp.transpose(out, (0, 3, 1, 2))        # back to NCHW


# ----------------------------------------------------------------------------
# Parameters (deterministic, synthetic) with eval-mode BatchNorm folding
# ----------------------------------------------------------------------------
def init_params(key, in_channels=256, out_channels=64, eps=1e-5):
    k1, k2 = jax.random.split(key)
    cin2 = 2 * in_channels
    w = jax.random.normal(k1, (cin2, out_channels), jnp.float32) / jnp.sqrt(cin2)
    b = 0.01 * jax.random.normal(k2, (out_channels,), jnp.float32)
    # Fresh-init BatchNorm2d, eval mode: gamma=1, beta=0, mean=0, var=1.
    scale = 1.0 / jnp.sqrt(1.0 + eps)
    w = w * scale
    b = b * scale
    return {
        "w_img": w[:in_channels],      # (Cin, Cout)  -> multiplies image_feat
        "w_other": w[in_channels:],    # (Cin, Cout)  -> multiplies other_feat
        "b": b,                        # (Cout,)
    }


def forward(params, image_feat, other_feat):
    return context_switching_block(image_feat, other_feat,
                                   params["w_img"], params["w_other"],
                                   params["b"])


def reference(params, image_feat, other_feat):
    """Pure-JAX f32 reference (concat + 1x1 conv + folded BN + ReLU)."""
    xa = jnp.transpose(image_feat, (0, 2, 3, 1))
    xb = jnp.transpose(other_feat, (0, 2, 3, 1))
    y = xa @ params["w_img"] + xb @ params["w_other"] + params["b"]
    y = jnp.maximum(y, 0.0)
    return jnp.transpose(y, (0, 3, 1, 2))


# ----------------------------------------------------------------------------
if __name__ == "__main__":
    key = jax.random.PRNGKey(0)
    pkey, ikey, okey = jax.random.split(key, 3)

    N, Cin, Cout, H, W = 2, 256, 64, 16, 16
    params = init_params(pkey, in_channels=Cin, out_channels=Cout)

    image_feat = jax.random.uniform(ikey, (N, Cin, H, W), jnp.float32)
    other_feat = jax.random.uniform(okey, (N, Cin, H, W), jnp.float32)

    fwd = jax.jit(functools.partial(forward, params))
    out = fwd(image_feat, other_feat)
    jax.block_until_ready(out)

    assert out.shape == (N, Cout, H, W), out.shape
    assert bool(jnp.all(jnp.isfinite(out)))

    # Loose tolerance: kernel runs the MXU in bf16 with f32 accumulation.
    ref = reference(params, image_feat, other_feat)
    max_err = float(jnp.max(jnp.abs(out - ref)))
    assert max_err < 0.1, f"max abs err vs reference: {max_err}"

    print("KERNEL_OK")
</pallas_src>

<mosaic_0001>
module attributes {stable_mosaic.version = 11 : i64} {
  func.func @_cs_block_kernel(%arg0: i32, %arg1: memref<256x256xbf16, #tpu.memory_space<vmem>>, %arg2: memref<256x256xbf16, #tpu.memory_space<vmem>>, %arg3: memref<256x64xbf16, #tpu.memory_space<vmem>>, %arg4: memref<256x64xbf16, #tpu.memory_space<vmem>>, %arg5: memref<1x64xf32, #tpu.memory_space<vmem>>, %arg6: memref<256x64xf32, #tpu.memory_space<vmem>>) attributes {dimension_semantics = [#tpu.dimension_semantics<parallel>], iteration_bounds = array<i64: 2>, scalar_prefetch = 0 : i64, scratch_operands = 0 : i64, tpu.core_type = #tpu.core_type<tc>, window_params = [{transform_indices = @transform_0, window_bounds = array<i64: 256, 256>}, {transform_indices = @transform_1, window_bounds = array<i64: 256, 256>}, {pipeline_mode = #tpu.pipeline_mode<synchronous>, transform_indices = @transform_2, window_bounds = array<i64: 256, 64>}, {pipeline_mode = #tpu.pipeline_mode<synchronous>, transform_indices = @transform_3, window_bounds = array<i64: 256, 64>}, {pipeline_mode = #tpu.pipeline_mode<synchronous>, transform_indices = @transform_4, window_bounds = array<i64: 1, 64>}, {transform_indices = @transform_5, window_bounds = array<i64: 256, 64>}]} {
    %c0 = arith.constant 0 : index
    %c0_0 = arith.constant 0 : index
    %0 = vector.load %arg1[%c0, %c0_0] : memref<256x256xbf16, #tpu.memory_space<vmem>>, vector<256x256xbf16>
    %c0_1 = arith.constant 0 : index
    %c0_2 = arith.constant 0 : index
    %1 = vector.load %arg3[%c0_1, %c0_2] : memref<256x64xbf16, #tpu.memory_space<vmem>>, vector<256x64xbf16>
    %cst = arith.constant dense<0.000000e+00> : vector<256x64xf32>
    %2 = tpu.matmul %0, %1, %cst {dimension_numbers = #tpu.dot_dimension_numbers<[1], [0], [0], [1], [0, 0, 1, 1], [], []>} : vector<256x256xbf16>, vector<256x64xbf16>, vector<256x64xf32> -> vector<256x64xf32>
    %c0_3 = arith.constant 0 : index
    %c0_4 = arith.constant 0 : index
    %3 = vector.load %arg2[%c0_3, %c0_4] : memref<256x256xbf16, #tpu.memory_space<vmem>>, vector<256x256xbf16>
    %c0_5 = arith.constant 0 : index
    %c0_6 = arith.constant 0 : index
    %4 = vector.load %arg4[%c0_5, %c0_6] : memref<256x64xbf16, #tpu.memory_space<vmem>>, vector<256x64xbf16>
    %cst_7 = arith.constant dense<0.000000e+00> : vector<256x64xf32>
    %5 = tpu.matmul %3, %4, %cst_7 {dimension_numbers = #tpu.dot_dimension_numbers<[1], [0], [0], [1], [0, 0, 1, 1], [], []>} : vector<256x256xbf16>, vector<256x64xbf16>, vector<256x64xf32> -> vector<256x64xf32>
    %6 = arith.addf %2, %5 : vector<256x64xf32>
    %c0_8 = arith.constant 0 : index
    %c0_9 = arith.constant 0 : index
    %7 = vector.load %arg5[%c0_8, %c0_9] : memref<1x64xf32, #tpu.memory_space<vmem>>, vector<1x64xf32>
    %8 = vector.broadcast %7 : vector<1x64xf32> to vector<256x64xf32>
    %9 = arith.addf %6, %8 : vector<256x64xf32>
    %cst_10 = arith.constant 0.000000e+00 : f32
    %10 = vector.broadcast %cst_10 : f32 to vector<256x64xf32>
    %11 = arith.maximumf %9, %10 : vector<256x64xf32>
    %c0_11 = arith.constant 0 : index
    %c0_12 = arith.constant 0 : index
    %12 = vector.load %arg6[%c0_11, %c0_12] : memref<256x64xf32, #tpu.memory_space<vmem>>, vector<256x64xf32>
    tpu.vector_store %arg6[%c0_11, %c0_12], %11 {strides = array<i32>} : memref<256x64xf32, #tpu.memory_space<vmem>>, vector<256x64xf32>,
    return
  }
  func.func @transform_0(%arg0: i32) -> (i32, i32) {
    %c0_i32 = arith.constant 0 : i32
    %c0_i32_0 = arith.constant 0 : i32
    return %arg0, %c0_i32 : i32, i32
  }
  func.func @transform_1(%arg0: i32) -> (i32, i32) {
    %c0_i32 = arith.constant 0 : i32
    %c0_i32_0 = arith.constant 0 : i32
    return %arg0, %c0_i32 : i32, i32
  }
  func.func @transform_2(%arg0: i32) -> (i32, i32) {
    %c0_i32 = arith.constant 0 : i32
    %c0_i32_0 = arith.constant 0 : i32
    %c0_i32_1 = arith.constant 0 : i32
    return %c0_i32, %c0_i32_0 : i32, i32
  }
  func.func @transform_3(%arg0: i32) -> (i32, i32) {
    %c0_i32 = arith.constant 0 : i32
    %c0_i32_0 = arith.constant 0 : i32
    %c0_i32_1 = arith.constant 0 : i32
    return %c0_i32, %c0_i32_0 : i32, i32
  }
  func.func @transform_4(%arg0: i32) -> (i32, i32) {
    %c0_i32 = arith.constant 0 : i32
    %c0_i32_0 = arith.constant 0 : i32
    %c0_i32_1 = arith.constant 0 : i32
    return %c0_i32, %c0_i32_0 : i32, i32
  }
  func.func @transform_5(%arg0: i32) -> (i32, i32) {
    %c0_i32 = arith.constant 0 : i32
    %c0_i32_0 = arith.constant 0 : i32
    return %arg0, %c0_i32 : i32, i32
  }
}

</mosaic_0001>

<llo_original>
// kernel: forward.1
$region0: #{forward.1}
  #allocation0 [shape = 'u32[]', space=smem, size = 0x4, offset = 0x4, fixed_abs, tag = 'smem constant byte address 0x4 - core index']
  #allocation1 [shape = 'u32[144,128]{1,0:T(1,128)}', space=vmem, size = 0x12000, scoped, tag = 'internal scratch']
  %s0 = inlined_call_operand.vmem [shape: bf16[512,256], index: 0, kind: input, shape index: {}]
  %s1 = inlined_call_operand.vmem [shape: bf16[512,256], index: 1, kind: input, shape index: {}]
  %s2 = inlined_call_operand.vmem [shape: bf16[256,64], index: 2, kind: input, shape index: {}]
  %s3 = inlined_call_operand.vmem [shape: bf16[256,64], index: 3, kind: input, shape index: {}]
  %s4 = inlined_call_operand.vmem [shape: f32[1,64], index: 4, kind: input, shape index: {}]
  %s5 = inlined_call_operand.hbm [shape: f32[512,64], index: 5, kind: output, shape index: {}]
  %s6 = sld [smem:[#allocation0]]
  $region53: #{forward.1} parent=0
    _
  %s8 = ssub.s32 1, %s6
  %s9 = scalar_select 0, %s8, %s6
  $region1: #{forward.1} parent=0
    #allocation2 [shape = 'u8[262144]{0}', space=vmem, size = 0x40000, scoped, tag = 'output window, operand 0']
    #allocation3 [shape = 's32[2]{0}', space=sflag, size = 0x8, scoped, tag = 'scoped memory for forward.1']
    %10 = vsyncpa [#allocation3], 0
    %s11 = scalar_lea.sflag [#allocation3], 1
    %12 = vsyncpa %s11, 0
    loop: start=0, step=1, limit=4
    $region2: #{forward.1} parent=1 // loop_pre_header
      _
    $region3: #{forward.1} parent=1 // loop_header
      %s14 = sphi 0, %s18
      %p15 = scmp.ge.s32.totalorder %s14, 4
      %s24 = sphi 0, %s26
      %s27 = sphi 0, %s24
      %s28 = sphi 0, %s27
      %s44 = sphi 0, %s28
      %s50 = sphi 0, %s52
      %s53 = sphi 0, %s50
      %s54 = sphi 0, %s53
      %s70 = sphi 0, %s54
      %s74 = sphi 0, %s74
      %s76 = sphi 0, %s74
      %s77 = sphi 0, %s76
      %s91 = sphi 0, %s77
      %s95 = sphi 0, %s95
      %s97 = sphi 0, %s95
      %s98 = sphi 0, %s97
      %s112 = sphi 0, %s98
      %s116 = sphi 0, %s116
      %s118 = sphi 0, %s116
      %s119 = sphi 0, %s118
      %s133 = sphi 0, %s119
      %s139 = sphi 0, %s141
      %s142 = sphi 0, %s139
      %s143 = sphi 0, %s142
      %s159 = sphi 0, %s143
    $region4: #{forward.1} parent=1 // loop_header_branch
      %17 = sbr.rel (%p15) target = $region8
    $region5: #{forward.1} parent=1 // loop_body
      %s19 = ssub.s32 %s14, 1
      %s20 = ssub.s32 %s14, 2
      %s21 = sadd.s32 %s14, 1
      %s22 = ssub.s32 %s14, %s21
      %p23 = scmp.eq.s32.totalorder %s22, 0
      %s25 = sadd.s32 %s24, 1
      %s26 = scalar_select %p23, %s24, %s25
      %p29 = pneg %p23
      %p30 = scmp.eq.s32.totalorder %s14, 1
      %p31 = por %p29, %p30
      %p32 = scmp.ne.s32.totalorder %s24, %s27
      %p33 = scmp.eq.s32.totalorder %s14, 0
      %p34 = por %p32, %p33
      %p35 = scmp.ne.s32.totalorder %s24, %s27
      %p36 = scmp.eq.s32.totalorder %s19, 1
      %p37 = por %p35, %p36
      %p38 = scmp.ne.s32.totalorder %s27, %s28
      %p39 = scmp.eq.s32.totalorder %s19, 0
      %p40 = por %p38, %p39
      %p41 = scmp.ne.s32.totalorder %s27, %s28
      %p42 = scmp.eq.s32.totalorder %s20, 1
      %p43 = por %p41, %p42
      %p45 = scmp.ne.s32.totalorder %s28, %s44
      %p46 = scmp.eq.s32.totalorder %s20, 0
      %p47 = por %p45, %p46
      %s48 = ssub.s32 %s14, %s21
      %p49 = scmp.eq.s32.totalorder %s48, 0
      %s51 = sadd.s32 %s50, 1
      %s52 = scalar_select %p49, %s50, %s51
      %p55 = pneg %p49
      %p56 = scmp.eq.s32.totalorder %s14, 1
      %p57 = por %p55, %p56
      %p58 = scmp.ne.s32.totalorder %s50, %s53
      %p59 = scmp.eq.s32.totalorder %s14, 0
      %p60 = por %p58, %p59
      %p61 = scmp.ne.s32.totalorder %s50, %s53
      %p62 = scmp.eq.s32.totalorder %s19, 1
      %p63 = por %p61, %p62
      %p64 = scmp.ne.s32.totalorder %s53, %s54
      %p65 = scmp.eq.s32.totalorder %s19, 0
      %p66 = por %p64, %p65
      %p67 = scmp.ne.s32.totalorder %s53, %s54
      %p68 = scmp.eq.s32.totalorder %s20, 1
      %p69 = por %p67, %p68
      %p71 = scmp.ne.s32.totalorder %s54, %s70
      %p72 = scmp.eq.s32.totalorder %s20, 0
      %p73 = por %p71, %p72
      %s75 = sadd.s32 %s74, 1
      %p78 = scmp.eq.s32.totalorder %s14, 1
      %p79 = scmp.ne.s32.totalorder %s74, %s76
      %p80 = scmp.eq.s32.totalorder %s14, 0
      %p81 = por %p79, %p80
      %p82 = scmp.ne.s32.totalorder %s74, %s76
      %p83 = scmp.eq.s32.totalorder %s19, 1
      %p84 = por %p82, %p83
      %p85 = scmp.ne.s32.totalorder %s76, %s77
      %p86 = scmp.eq.s32.totalorder %s19, 0
      %p87 = por %p85, %p86
      %p88 = scmp.ne.s32.totalorder %s76, %s77
      %p89 = scmp.eq.s32.totalorder %s20, 1
      %p90 = por %p88, %p89
      %p92 = scmp.ne.s32.totalorder %s77, %s91
      %p93 = scmp.eq.s32.totalorder %s20, 0
      %p94 = por %p92, %p93
      %s96 = sadd.s32 %s95, 1
      %p99 = scmp.eq.s32.totalorder %s14, 1
      %p100 = scmp.ne.s32.totalorder %s95, %s97
      %p101 = scmp.eq.s32.totalorder %s14, 0
      %p102 = por %p100, %p101
      %p103 = scmp.ne.s32.totalorder %s95, %s97
      %p104 = scmp.eq.s32.totalorder %s19, 1
      %p105 = por %p103, %p104
      %p106 = scmp.ne.s32.totalorder %s97, %s98
      %p107 = scmp.eq.s32.totalorder %s19, 0
      %p108 = por %p106, %p107
      %p109 = scmp.ne.s32.totalorder %s97, %s98
      %p110 = scmp.eq.s32.totalorder %s20, 1
      %p111 = por %p109, %p110
      %p113 = scmp.ne.s32.totalorder %s98, %s112
      %p114 = scmp.eq.s32.totalorder %s20, 0
      %p115 = por %p113, %p114
      %s117 = sadd.s32 %s116, 1
      %p120 = scmp.eq.s32.totalorder %s14, 1
      %p121 = scmp.ne.s32.totalorder %s116, %s118
      %p122 = scmp.eq.s32.totalorder %s14, 0
      %p123 = por %p121, %p122
      %p124 = scmp.ne.s32.totalorder %s116, %s118
      %p125 = scmp.eq.s32.totalorder %s19, 1
      %p126 = por %p124, %p125
      %p127 = scmp.ne.s32.totalorder %s118, %s119
      %p128 = scmp.eq.s32.totalorder %s19, 0
      %p129 = por %p127, %p128
      %p130 = scmp.ne.s32.totalorder %s118, %s119
      %p131 = scmp.eq.s32.totalorder %s20, 1
      %p132 = por %p130, %p131
      %p134 = scmp.ne.s32.totalorder %s119, %s133
      %p135 = scmp.eq.s32.totalorder %s20, 0
      %p136 = por %p134, %p135
      %s137 = ssub.s32 %s14, %s21
      %p138 = scmp.eq.s32.totalorder %s137, 0
      %s140 = sadd.s32 %s139, 1
      %s141 = scalar_select %p138, %s139, %s140
      %p144 = pneg %p138
      %p145 = scmp.eq.s32.totalorder %s14, 1
      %p146 = por %p144, %p145
      %p147 = scmp.ne.s32.totalorder %s139, %s142
      %p148 = scmp.eq.s32.totalorder %s14, 0
      %p149 = por %p147, %p148
      %p150 = scmp.ne.s32.totalorder %s139, %s142
      %p151 = scmp.eq.s32.totalorder %s19, 1
      %p152 = por %p150, %p151
      %p153 = scmp.ne.s32.totalorder %s142, %s143
      %p154 = scmp.eq.s32.totalorder %s19, 0
      %p155 = por %p153, %p154
      %p156 = scmp.ne.s32.totalorder %s142, %s143
      %p157 = scmp.eq.s32.totalorder %s20, 1
      %p158 = por %p156, %p157
      %p160 = scmp.ne.s32.totalorder %s143, %s159
      %p161 = scmp.eq.s32.totalorder %s20, 0
      %p162 = por %p160, %p161
      %p163 = scmp.le.s32.totalorder 1, %s14
      %p164 = scmp.lt.s32.totalorder %s14, 3
      %p165 = pnand %p163, %p164
      %p166 = pneg %p165
      // Predicated region
      $region9: #{forward.1} parent=5 // pred_check
        _
      $region10: #{forward.1} parent=5 // pred_check_branch
        %168 = sbr.rel (%p165) target = $region12
      $region11: #{forward.1} parent=5 // pred_region
        %s169 = ssub.s32 %s14, 1
        // Predicated region
        $region13: #{forward.1} parent=11 // pred_check
          %p170 = pneg %p87
        $region14: #{forward.1} parent=11 // pred_check_branch
          %172 = sbr.rel (%p170) target = $region16
        $region15: #{forward.1} parent=11 // pred_region
          _
        $region16: #{forward.1} parent=11 // pred_fallthru
          _
        // Predicated region
        $region17: #{forward.1} parent=11 // pred_check
          %p173 = pneg %p108
        $region18: #{forward.1} parent=11 // pred_check_branch
          %175 = sbr.rel (%p173) target = $region20
        $region19: #{forward.1} parent=11 // pred_region
          _
        $region20: #{forward.1} parent=11 // pred_fallthru
          _
        // Predicated region
        $region21: #{forward.1} parent=11 // pred_check
          %p176 = pneg %p129
        $region22: #{forward.1} parent=11 // pred_check_branch
          %178 = sbr.rel (%p176) target = $region24
        $region23: #{forward.1} parent=11 // pred_region
          _
        $region24: #{forward.1} parent=11 // pred_fallthru
          _
      $region12: #{forward.1} parent=5 // pred_fallthru
        _
      %p179 = scmp.lt.s32.totalorder %s14, 2
      // Predicated region
      $region25: #{forward.1} parent=5 // pred_check
        %p180 = pneg %p179
      $region26: #{forward.1} parent=5 // pred_check_branch
        %182 = sbr.rel (%p180) target = $region28
      $region27: #{forward.1} parent=5 // pred_region
        // Predicated region
        $region29: #{forward.1} parent=27 // pred_check
          %p183 = pneg %p34
        $region30: #{forward.1} parent=27 // pred_check_branch
          %185 = sbr.rel (%p183) target = $region32
        $region31: #{forward.1} parent=27 // pred_region
          %s186 = smul.u32 32, %s14
          %p187 = scmp.lt.s32.totalorder %s186, 63
          %s188 = scalar_select %p187, %s186, 63
          %s189 = smul.addr %s188, 2
          %s190 = smul.addr %s189, 4
          %s191 = scalar_lea.vmem %s0, %s190
          %s192 = smul.u32 32, %s14
        $region32: #{forward.1} parent=27 // pred_fallthru
          _
        // Predicated region
        $region33: #{forward.1} parent=27 // pred_check
          %p193 = pneg %p60
        $region34: #{forward.1} parent=27 // pred_check_branch
          %195 = sbr.rel (%p193) target = $region36
        $region35: #{forward.1} parent=27 // pred_region
          %s196 = smul.u32 32, %s14
          %p197 = scmp.lt.s32.totalorder %s196, 63
          %s198 = scalar_select %p197, %s196, 63
          %s199 = smul.addr %s198, 2
          %s200 = smul.addr %s199, 4
          %s201 = scalar_lea.vmem %s1, %s200
          %s202 = smul.u32 32, %s14
        $region36: #{forward.1} parent=27 // pred_fallthru
          _
      $region28: #{forward.1} parent=5 // pred_fallthru
        _
      %p203 = scmp.le.s32.totalorder 1, %s14
      %p204 = scmp.lt.s32.totalorder %s14, 3
      %p205 = pnand %p203, %p204
      %p206 = pneg %p205
      // Predicated region
      $region37: #{forward.1} parent=5 // pred_check
        _
      $region38: #{forward.1} parent=5 // pred_check_branch
        %208 = sbr.rel (%p205) target = $region40
      $region39: #{forward.1} parent=5 // pred_region
        %s209 = ssub.s32 %s14, 1
        %s210 = smul.u32 32, %s19
        %p211 = scmp.lt.s32.totalorder %s210, 63
        %s212 = scalar_select %p211, %s210, 63
        %s213 = smul.addr %s212, 2
        %s214 = smul.addr %s213, 4
        %s215 = scalar_lea.vmem %s0, %s214
        %p216 = pneg %p40
        %p217 = pneg %p37
        %s218 = smul.u32 32, %s19
        %p219 = scmp.lt.s32.totalorder %s218, 63
        %s220 = scalar_select %p219, %s218, 63
        %s221 = smul.addr %s220, 2
        %s222 = smul.addr %s221, 4
        %s223 = scalar_lea.vmem %s1, %s222
        %p224 = pneg %p66
        %p225 = pneg %p63
        %p226 = pneg %p87
        %p227 = pneg %p84
        %p228 = pneg %p108
        %p229 = pneg %p105
        %p230 = pneg %p129
        %p231 = pneg %p126
        %p232 = pneg %p155
        %p233 = pneg %p152
        %s234 = sand.u32 %s142, 1
        %s235 = scalar_lea.sflag [#allocation3], %s234
        %s236 = sand.u32 %s142, 1
        %s237 = smul.addr %s236, 256
        %s238 = scalar_lea.vmem [#allocation2], %s237
        %s239 = smul.u32 32, %s19
        %p240 = scmp.lt.s32.totalorder %s239, 63
        %s241 = scalar_select %p240, %s239, 63
        %s242 = smul.addr %s241, 2
        %s243 = smul.addr %s242, 4
        %s244 = scalar_lea.vmem %s0, %s243
        %s245 = smul.u32 32, %s19
        %s246 = smul.u32 32, %s19
        %p247 = scmp.lt.s32.totalorder %s246, 63
        %s248 = scalar_select %p247, %s246, 63
        %s249 = smul.addr %s248, 2
        %s250 = smul.addr %s249, 4
        %s251 = scalar_lea.vmem %s1, %s250
        %s252 = smul.u32 32, %s19
        %s253 = smul.u32 32, %s19
        %v255 = vld [vmem:[%s244] sm:$0xff]
        %v256 = vld [vmem:[%s244 + $0x8] sm:$0xff]
        %v257 = vld [vmem:[%s244 + $0x10] sm:$0xff]
        %v258 = vld [vmem:[%s244 + $0x18] sm:$0xff]
        %v259 = vld [vmem:[%s244 + $0x20] sm:$0xff]
        %v260 = vld [vmem:[%s244 + $0x28] sm:$0xff]
        %v261 = vld [vmem:[%s244 + $0x30] sm:$0xff]
        %v262 = vld [vmem:[%s244 + $0x38] sm:$0xff]
        %v263 = vld [vmem:[%s244 + $0x40] sm:$0xff]
        %v264 = vld [vmem:[%s244 + $0x48] sm:$0xff]
        %v265 = vld [vmem:[%s244 + $0x50] sm:$0xff]
        %v266 = vld [vmem:[%s244 + $0x58] sm:$0xff]
        %v267 = vld [vmem:[%s244 + $0x60] sm:$0xff]
        %v268 = vld [vmem:[%s244 + $0x68] sm:$0xff]
        %v269 = vld [vmem:[%s244 + $0x70] sm:$0xff]
        %v270 = vld [vmem:[%s244 + $0x78] sm:$0xff]
        %v271 = vld [vmem:[%s244 + $0x80] sm:$0xff]
        %v272 = vld [vmem:[%s244 + $0x88] sm:$0xff]
        %v273 = vld [vmem:[%s244 + $0x90] sm:$0xff]
        %v274 = vld [vmem:[%s244 + $0x98] sm:$0xff]
        %v275 = vld [vmem:[%s244 + $0xa0] sm:$0xff]
        %v276 = vld [vmem:[%s244 + $0xa8] sm:$0xff]
        %v277 = vld [vmem:[%s244 + $0xb0] sm:$0xff]
        %v278 = vld [vmem:[%s244 + $0xb8] sm:$0xff]
        %v279 = vld [vmem:[%s244 + $0xc0] sm:$0xff]
        %v280 = vld [vmem:[%s244 + $0xc8] sm:$0xff]
        %v281 = vld [vmem:[%s244 + $0xd0] sm:$0xff]
        %v282 = vld [vmem:[%s244 + $0xd8] sm:$0xff]
        %v283 = vld [vmem:[%s244 + $0xe0] sm:$0xff]
        %v284 = vld [vmem:[%s244 + $0xe8] sm:$0xff]
        %v285 = vld [vmem:[%s244 + $0xf0] sm:$0xff]
        %v286 = vld [vmem:[%s244 + $0xf8] sm:$0xff]
        %v287 = vld [vmem:[%s2] sm:$0xf]
        %v288 = vld [vmem:[%s2 + $0x4] sm:$0xf]
        %v289 = vld [vmem:[%s2 + $0x8] sm:$0xf]
        %v290 = vld [vmem:[%s2 + $0xc] sm:$0xf]
        %v291 = vld [vmem:[%s2 + $0x10] sm:$0xf]
        %v292 = vld [vmem:[%s2 + $0x14] sm:$0xf]
        %v293 = vld [vmem:[%s2 + $0x18] sm:$0xf]
        %v294 = vld [vmem:[%s2 + $0x1c] sm:$0xf]
        %v295 = vld [vmem:[%s2 + $0x20] sm:$0xf]
        %v296 = vld [vmem:[%s2 + $0x24] sm:$0xf]
        %v297 = vld [vmem:[%s2 + $0x28] sm:$0xf]
        %v298 = vld [vmem:[%s2 + $0x2c] sm:$0xf]
        %v299 = vld [vmem:[%s2 + $0x30] sm:$0xf]
        %v300 = vld [vmem:[%s2 + $0x34] sm:$0xf]
        %v301 = vld [vmem:[%s2 + $0x38] sm:$0xf]
        %v302 = vld [vmem:[%s2 + $0x3c] sm:$0xf]
        %v303 = vld [vmem:[%s2 + $0x40] sm:$0xf]
        %v304 = vld [vmem:[%s2 + $0x44] sm:$0xf]
        %v305 = vld [vmem:[%s2 + $0x48] sm:$0xf]
        %v306 = vld [vmem:[%s2 + $0x4c] sm:$0xf]
        %v307 = vld [vmem:[%s2 + $0x50] sm:$0xf]
        %v308 = vld [vmem:[%s2 + $0x54] sm:$0xf]
        %v309 = vld [vmem:[%s2 + $0x58] sm:$0xf]
        %v310 = vld [vmem:[%s2 + $0x5c] sm:$0xf]
        %v311 = vld [vmem:[%s2 + $0x60] sm:$0xf]
        %v312 = vld [vmem:[%s2 + $0x64] sm:$0xf]
        %v313 = vld [vmem:[%s2 + $0x68] sm:$0xf]
        %v314 = vld [vmem:[%s2 + $0x6c] sm:$0xf]
        %v315 = vld [vmem:[%s2 + $0x70] sm:$0xf]
        %v316 = vld [vmem:[%s2 + $0x74] sm:$0xf]
        %v317 = vld [vmem:[%s2 + $0x78] sm:$0xf]
        %v318 = vld [vmem:[%s2 + $0x7c] sm:$0xf]
        %v319 = vld [vmem:[%s251] sm:$0xff]
        %v320 = vld [vmem:[%s251 + $0x8] sm:$0xff]
        %v321 = vld [vmem:[%s251 + $0x10] sm:$0xff]
        %v322 = vld [vmem:[%s251 + $0x18] sm:$0xff]
        %v323 = vld [vmem:[%s251 + $0x20] sm:$0xff]
        %v324 = vld [vmem:[%s251 + $0x28] sm:$0xff]
        %v325 = vld [vmem:[%s251 + $0x30] sm:$0xff]
        %v326 = vld [vmem:[%s251 + $0x38] sm:$0xff]
        %v327 = vld [vmem:[%s251 + $0x40] sm:$0xff]
        %v328 = vld [vmem:[%s251 + $0x48] sm:$0xff]
        %v329 = vld [vmem:[%s251 + $0x50] sm:$0xff]
        %v330 = vld [vmem:[%s251 + $0x58] sm:$0xff]
        %v331 = vld [vmem:[%s251 + $0x60] sm:$0xff]
        %v332 = vld [vmem:[%s251 + $0x68] sm:$0xff]
        %v333 = vld [vmem:[%s251 + $0x70] sm:$0xff]
        %v334 = vld [vmem:[%s251 + $0x78] sm:$0xff]
        %v335 = vld [vmem:[%s251 + $0x80] sm:$0xff]
        %v336 = vld [vmem:[%s251 + $0x88] sm:$0xff]
        %v337 = vld [vmem:[%s251 + $0x90] sm:$0xff]
        %v338 = vld [vmem:[%s251 + $0x98] sm:$0xff]
        %v339 = vld [vmem:[%s251 + $0xa0] sm:$0xff]
        %v340 = vld [vmem:[%s251 + $0xa8] sm:$0xff]
        %v341 = vld [vmem:[%s251 + $0xb0] sm:$0xff]
        %v342 = vld [vmem:[%s251 + $0xb8] sm:$0xff]
        %v343 = vld [vmem:[%s251 + $0xc0] sm:$0xff]
        %v344 = vld [vmem:[%s251 + $0xc8] sm:$0xff]
        %v345 = vld [vmem:[%s251 + $0xd0] sm:$0xff]
        %v346 = vld [vmem:[%s251 + $0xd8] sm:$0xff]
        %v347 = vld [vmem:[%s251 + $0xe0] sm:$0xff]
        %v348 = vld [vmem:[%s251 + $0xe8] sm:$0xff]
        %v349 = vld [vmem:[%s251 + $0xf0] sm:$0xff]
        %v350 = vld [vmem:[%s251 + $0xf8] sm:$0xff]
        %v351 = vld [vmem:[%s3] sm:$0xf]
        %v352 = vld [vmem:[%s3 + $0x4] sm:$0xf]
        %v353 = vld [vmem:[%s3 + $0x8] sm:$0xf]
        %v354 = vld [vmem:[%s3 + $0xc] sm:$0xf]
        %v355 = vld [vmem:[%s3 + $0x10] sm:$0xf]
        %v356 = vld [vmem:[%s3 + $0x14] sm:$0xf]
        %v357 = vld [vmem:[%s3 + $0x18] sm:$0xf]
        %v358 = vld [vmem:[%s3 + $0x1c] sm:$0xf]
        %v359 = vld [vmem:[%s3 + $0x20] sm:$0xf]
        %v360 = vld [vmem:[%s3 + $0x24] sm:$0xf]
        %v361 = vld [vmem:[%s3 + $0x28] sm:$0xf]
        %v362 = vld [vmem:[%s3 + $0x2c] sm:$0xf]
        %v363 = vld [vmem:[%s3 + $0x30] sm:$0xf]
        %v364 = vld [vmem:[%s3 + $0x34] sm:$0xf]
        %v365 = vld [vmem:[%s3 + $0x38] sm:$0xf]
        %v366 = vld [vmem:[%s3 + $0x3c] sm:$0xf]
        %v367 = vld [vmem:[%s3 + $0x40] sm:$0xf]
        %v368 = vld [vmem:[%s3 + $0x44] sm:$0xf]
        %v369 = vld [vmem:[%s3 + $0x48] sm:$0xf]
        %v370 = vld [vmem:[%s3 + $0x4c] sm:$0xf]
        %v371 = vld [vmem:[%s3 + $0x50] sm:$0xf]
        %v372 = vld [vmem:[%s3 + $0x54] sm:$0xf]
        %v373 = vld [vmem:[%s3 + $0x58] sm:$0xf]
        %v374 = vld [vmem:[%s3 + $0x5c] sm:$0xf]
        %v375 = vld [vmem:[%s3 + $0x60] sm:$0xf]
        %v376 = vld [vmem:[%s3 + $0x64] sm:$0xf]
        %v377 = vld [vmem:[%s3 + $0x68] sm:$0xf]
        %v378 = vld [vmem:[%s3 + $0x6c] sm:$0xf]
        %v379 = vld [vmem:[%s3 + $0x70] sm:$0xf]
        %v380 = vld [vmem:[%s3 + $0x74] sm:$0xf]
        %v381 = vld [vmem:[%s3 + $0x78] sm:$0xf]
        %v382 = vld [vmem:[%s3 + $0x7c] sm:$0xf]
        %v415 = vunpack.c.l.b16 %v319
        %v416 = vunpack.c.h.b16 %v319
        %v417 = vunpack.c.l.b16 %v320
        %v418 = vunpack.c.h.b16 %v320
        %v419 = vunpack.c.l.b16 %v321
        %v420 = vunpack.c.h.b16 %v321
        %v421 = vunpack.c.l.b16 %v322
        %v422 = vunpack.c.h.b16 %v322
        %v423 = vunpack.c.l.b16 %v323
        %v424 = vunpack.c.h.b16 %v323
        %v425 = vunpack.c.l.b16 %v324
        %v426 = vunpack.c.h.b16 %v324
        %v427 = vunpack.c.l.b16 %v325
        %v428 = vunpack.c.h.b16 %v325
        %v429 = vunpack.c.l.b16 %v326
        %v430 = vunpack.c.h.b16 %v326
        %v431 = vunpack.c.l.b16 %v327
        %v432 = vunpack.c.h.b16 %v327
        %v433 = vunpack.c.l.b16 %v328
        %v434 = vunpack.c.h.b16 %v328
        %v435 = vunpack.c.l.b16 %v329
        %v436 = vunpack.c.h.b16 %v329
        %v437 = vunpack.c.l.b16 %v330
        %v438 = vunpack.c.h.b16 %v330
        %v439 = vunpack.c.l.b16 %v331
        %v440 = vunpack.c.h.b16 %v331
        %v441 = vunpack.c.l.b16 %v332
        %v442 = vunpack.c.h.b16 %v332
        %v443 = vunpack.c.l.b16 %v333
        %v444 = vunpack.c.h.b16 %v333
        %v445 = vunpack.c.l.b16 %v334
        %v446 = vunpack.c.h.b16 %v334
        %v447 = vunpack.c.l.b16 %v335
        %v448 = vunpack.c.h.b16 %v335
        %v449 = vunpack.c.l.b16 %v336
        %v450 = vunpack.c.h.b16 %v336
        %v451 = vunpack.c.l.b16 %v337
        %v452 = vunpack.c.h.b16 %v337
        %v453 = vunpack.c.l.b16 %v338
        %v454 = vunpack.c.h.b16 %v338
        %v455 = vunpack.c.l.b16 %v339
        %v456 = vunpack.c.h.b16 %v339
        %v457 = vunpack.c.l.b16 %v340
        %v458 = vunpack.c.h.b16 %v340
        %v459 = vunpack.c.l.b16 %v341
        %v460 = vunpack.c.h.b16 %v341
        %v461 = vunpack.c.l.b16 %v342
        %v462 = vunpack.c.h.b16 %v342
        %v463 = vunpack.c.l.b16 %v343
        %v464 = vunpack.c.h.b16 %v343
        %v465 = vunpack.c.l.b16 %v344
        %v466 = vunpack.c.h.b16 %v344
        %v467 = vunpack.c.l.b16 %v345
        %v468 = vunpack.c.h.b16 %v345
        %v469 = vunpack.c.l.b16 %v346
        %v470 = vunpack.c.h.b16 %v346
        %v471 = vunpack.c.l.b16 %v347
        %v472 = vunpack.c.h.b16 %v347
        %v473 = vunpack.c.l.b16 %v348
        %v474 = vunpack.c.h.b16 %v348
        %v475 = vunpack.c.l.b16 %v349
        %v476 = vunpack.c.h.b16 %v349
        %v477 = vunpack.c.l.b16 %v350
        %v478 = vunpack.c.h.b16 %v350
        %v479 = vpack.c.b16 %v417, %v415
        %v480 = vpack.c.b16 %v418, %v416
        %v481 = vpack.c.b16 %v421, %v419
        %v482 = vpack.c.b16 %v422, %v420
        %v483 = vpack.c.b16 %v425, %v423
        %v484 = vpack.c.b16 %v426, %v424
        %v485 = vpack.c.b16 %v429, %v427
        %v486 = vpack.c.b16 %v430, %v428
        %v487 = vpack.c.b16 %v433, %v431
        %v488 = vpack.c.b16 %v434, %v432
        %v489 = vpack.c.b16 %v437, %v435
        %v490 = vpack.c.b16 %v438, %v436
        %v491 = vpack.c.b16 %v441, %v439
        %v492 = vpack.c.b16 %v442, %v440
        %v493 = vpack.c.b16 %v445, %v443
        %v494 = vpack.c.b16 %v446, %v444
        %v495 = vpack.c.b16 %v449, %v447
        %v496 = vpack.c.b16 %v450, %v448
        %v497 = vpack.c.b16 %v453, %v451
        %v498 = vpack.c.b16 %v454, %v452
        %v499 = vpack.c.b16 %v457, %v455
        %v500 = vpack.c.b16 %v458, %v456
        %v501 = vpack.c.b16 %v461, %v459
        %v502 = vpack.c.b16 %v462, %v460
        %v503 = vpack.c.b16 %v465, %v463
        %v504 = vpack.c.b16 %v466, %v464
        %v505 = vpack.c.b16 %v469, %v467
        %v506 = vpack.c.b16 %v470, %v468
        %v507 = vpack.c.b16 %v473, %v471
        %v508 = vpack.c.b16 %v474, %v472
        %v509 = vpack.c.b16 %v477, %v475
        %v510 = vpack.c.b16 %v478, %v476
        %v575 = vunpack.c.l.b16 %v351
        %v576 = vunpack.c.l.b16 %v352
        %v577 = vunpack.c.l.b16 %v353
        %v578 = vunpack.c.l.b16 %v354
        %v579 = vunpack.c.l.b16 %v355
        %v580 = vunpack.c.l.b16 %v356
        %v581 = vunpack.c.l.b16 %v357
        %v582 = vunpack.c.l.b16 %v358
        %v583 = vunpack.c.l.b16 %v359
        %v584 = vunpack.c.l.b16 %v360
        %v585 = vunpack.c.l.b16 %v361
        %v586 = vunpack.c.l.b16 %v362
        %v587 = vunpack.c.l.b16 %v363
        %v588 = vunpack.c.l.b16 %v364
        %v589 = vunpack.c.l.b16 %v365
        %v590 = vunpack.c.l.b16 %v366
        %v591 = vunpack.c.l.b16 %v367
        %v592 = vunpack.c.l.b16 %v368
        %v593 = vunpack.c.l.b16 %v369
        %v594 = vunpack.c.l.b16 %v370
        %v595 = vunpack.c.l.b16 %v371
        %v596 = vunpack.c.l.b16 %v372
        %v597 = vunpack.c.l.b16 %v373
        %v598 = vunpack.c.l.b16 %v374
        %v599 = vunpack.c.l.b16 %v375
        %v600 = vunpack.c.l.b16 %v376
        %v601 = vunpack.c.l.b16 %v377
        %v602 = vunpack.c.l.b16 %v378
        %v603 = vunpack.c.l.b16 %v379
        %v604 = vunpack.c.l.b16 %v380
        %v605 = vunpack.c.l.b16 %v381
        %v606 = vunpack.c.l.b16 %v382
        %v607 = vpack.c.b16 %v576, %v575
        %v608 = vpack.c.b16 %v578, %v577
        %v609 = vpack.c.b16 %v580, %v579
        %v610 = vpack.c.b16 %v582, %v581
        %v611 = vpack.c.b16 %v584, %v583
        %v612 = vpack.c.b16 %v586, %v585
        %v613 = vpack.c.b16 %v588, %v587
        %v614 = vpack.c.b16 %v590, %v589
        %v615 = vpack.c.b16 %v592, %v591
        %v616 = vpack.c.b16 %v594, %v593
        %v617 = vpack.c.b16 %v596, %v595
        %v618 = vpack.c.b16 %v598, %v597
        %v619 = vpack.c.b16 %v600, %v599
        %v620 = vpack.c.b16 %v602, %v601
        %v621 = vpack.c.b16 %v604, %v603
        %v622 = vpack.c.b16 %v606, %v605
        %639 = vmatprep.subr.bf16.mxu0 0
        %640 = vmatpush1.bf16.msra.mxu0 %v607
        %641 = vmatprep.subr.bf16.mxu0 0
        %642 = vmatpush1.bf16.msra.mxu0 %v608
        %643 = vmatprep.subr.bf16.mxu0 0
        %644 = vmatpush1.bf16.msra.mxu0 %v609
        %645 = vmatprep.subr.bf16.mxu0 0
        %646 = vmatpush1.bf16.msra.mxu0 %v610
        %647 = vmatprep.subr.bf16.mxu0 0
        %648 = vmatpush1.bf16.msra.mxu0 %v611
        %649 = vmatprep.subr.bf16.mxu0 0
        %650 = vmatpush1.bf16.msra.mxu0 %v612
        %651 = vmatprep.subr.bf16.mxu0 0
        %652 = vmatpush1.bf16.msra.mxu0 %v613
        %653 = vmatprep.subr.bf16.mxu0 0
        %654 = vmatpush1.bf16.msra.mxu0 %v614
        %655 = vmatprep.subr.bf16.mxu0 0
        %656 = vmatpush1.bf16.msra.mxu0 %v615
        %657 = vmatprep.subr.bf16.mxu0 0
        %658 = vmatpush1.bf16.msra.mxu0 %v616
        %659 = vmatprep.subr.bf16.mxu0 0
        %660 = vmatpush1.bf16.msra.mxu0 %v617
        %661 = vmatprep.subr.bf16.mxu0 0
        %662 = vmatpush1.bf16.msra.mxu0 %v618
        %663 = vmatprep.subr.bf16.mxu0 0
        %664 = vmatpush1.bf16.msra.mxu0 %v619
        %665 = vmatprep.subr.bf16.mxu0 0
        %666 = vmatpush1.bf16.msra.mxu0 %v620
        %667 = vmatprep.subr.bf16.mxu0 0
        %668 = vmatpush1.bf16.msra.mxu0 %v621
        %669 = vmatprep.subr.bf16.mxu0 0
        %670 = vmatpush1.bf16.msra.mxu0 %v622
        %671 = vmatprep.mubr.bf16.mxu0 %v480
        %672 = vmatmul.mubr.bf16.gmra.mrb[0].mxu0 %v479
        %v673 = vpop.f32.mrb[0].mxu0
        %v674 = vadd.f32 0.0, %v673
        %v675 = vpop.f32.mrb[0].mxu0
        %v676 = vpop.f32.mrb[0].mxu0
        %v677 = vadd.f32 0.0, %v676
        %v678 = vpop.f32.mrb[0].mxu0
        %679 = vmatprep.mubr.bf16.mxu0 %v482
        %680 = vmatmul.mubr.bf16.gmra.mrb[0].mxu0 %v481
        %v681 = vpop.f32.mrb[0].mxu0
        %v682 = vadd.f32 0.0, %v681
        %v683 = vpop.f32.mrb[0].mxu0
        %v684 = vpop.f32.mrb[0].mxu0
        %v685 = vadd.f32 0.0, %v684
        %v686 = vpop.f32.mrb[0].mxu0
        %687 = vmatprep.mubr.bf16.mxu0 %v484
        %688 = vmatmul.mubr.bf16.gmra.mrb[0].mxu0 %v483
        %v689 = vpop.f32.mrb[0].mxu0
        %v690 = vadd.f32 0.0, %v689
        %v691 = vpop.f32.mrb[0].mxu0
        %v692 = vpop.f32.mrb[0].mxu0
        %v693 = vadd.f32 0.0, %v692
        %v694 = vpop.f32.mrb[0].mxu0
        %695 = vmatprep.mubr.bf16.mxu0 %v486
        %696 = vmatmul.mubr.bf16.gmra.mrb[0].mxu0 %v485
        %v697 = vpop.f32.mrb[0].mxu0
        %v698 = vadd.f32 0.0, %v697
        %v699 = vpop.f32.mrb[0].mxu0
        %v700 = vpop.f32.mrb[0].mxu0
        %v701 = vadd.f32 0.0, %v700
        %v702 = vpop.f32.mrb[0].mxu0
        %703 = vmatprep.mubr.bf16.mxu0 %v488
        %704 = vmatmul.mubr.bf16.gmra.mrb[0].mxu0 %v487
        %v705 = vpop.f32.mrb[0].mxu0
        %v706 = vadd.f32 0.0, %v705
        %v707 = vpop.f32.mrb[0].mxu0
        %v708 = vpop.f32.mrb[0].mxu0
        %v709 = vadd.f32 0.0, %v708
        %v710 = vpop.f32.mrb[0].mxu0
        %711 = vmatprep.mubr.bf16.mxu0 %v490
        %712 = vmatmul.mubr.bf16.gmra.mrb[0].mxu0 %v489
        %v713 = vpop.f32.mrb[0].mxu0
        %v714 = vadd.f32 0.0, %v713
        %v715 = vpop.f32.mrb[0].mxu0
        %v716 = vpop.f32.mrb[0].mxu0
        %v717 = vadd.f32 0.0, %v716
        %v718 = vpop.f32.mrb[0].mxu0
        %719 = vmatprep.mubr.bf16.mxu0 %v492
        %720 = vmatmul.mubr.bf16.gmra.mrb[0].mxu0 %v491
        %v721 = vpop.f32.mrb[0].mxu0
        %v722 = vadd.f32 0.0, %v721
        %v723 = vpop.f32.mrb[0].mxu0
        %v724 = vpop.f32.mrb[0].mxu0
        %v725 = vadd.f32 0.0, %v724
        %v726 = vpop.f32.mrb[0].mxu0
        %727 = vmatprep.mubr.bf16.mxu0 %v494
        %728 = vmatmul.mubr.bf16.gmra.mrb[0].mxu0 %v493
        %v729 = vpop.f32.mrb[0].mxu0
        %v730 = vadd.f32 0.0, %v729
        %v731 = vpop.f32.mrb[0].mxu0
        %v732 = vpop.f32.mrb[0].mxu0
        %v733 = vadd.f32 0.0, %v732
        %v734 = vpop.f32.mrb[0].mxu0
        %735 = vmatprep.mubr.bf16.mxu0 %v496
        %736 = vmatmul.mubr.bf16.gmra.mrb[0].mxu0 %v495
        %v737 = vpop.f32.mrb[0].mxu0
        %v738 = vadd.f32 0.0, %v737
        %v739 = vpop.f32.mrb[0].mxu0
        %v740 = vpop.f32.mrb[0].mxu0
        %v741 = vadd.f32 0.0, %v740
        %v742 = vpop.f32.mrb[0].mxu0
        %743 = vmatprep.mubr.bf16.mxu0 %v498
        %744 = vmatmul.mubr.bf16.gmra.mrb[0].mxu0 %v497
        %v745 = vpop.f32.mrb[0].mxu0
        %v746 = vadd.f32 0.0, %v745
        %v747 = vpop.f32.mrb[0].mxu0
        %v748 = vpop.f32.mrb[0].mxu0
        %v749 = vadd.f32 0.0, %v748
        %v750 = vpop.f32.mrb[0].mxu0
        %751 = vmatprep.mubr.bf16.mxu0 %v500
        %752 = vmatmul.mubr.bf16.gmra.mrb[0].mxu0 %v499
        %v753 = vpop.f32.mrb[0].mxu0
        %v754 = vadd.f32 0.0, %v753
        %v755 = vpop.f32.mrb[0].mxu0
        %v756 = vpop.f32.mrb[0].mxu0
        %v757 = vadd.f32 0.0, %v756
        %v758 = vpop.f32.mrb[0].mxu0
        %759 = vmatprep.mubr.bf16.mxu0 %v502
        %760 = vmatmul.mubr.bf16.gmra.mrb[0].mxu0 %v501
        %v761 = vpop.f32.mrb[0].mxu0
        %v762 = vadd.f32 0.0, %v761
        %v763 = vpop.f32.mrb[0].mxu0
        %v764 = vpop.f32.mrb[0].mxu0
        %v765 = vadd.f32 0.0, %v764
        %v766 = vpop.f32.mrb[0].mxu0
        %767 = vmatprep.mubr.bf16.mxu0 %v504
        %768 = vmatmul.mubr.bf16.gmra.mrb[0].mxu0 %v503
        %v769 = vpop.f32.mrb[0].mxu0
        %v770 = vadd.f32 0.0, %v769
        %v771 = vpop.f32.mrb[0].mxu0
        %v772 = vpop.f32.mrb[0].mxu0
        %v773 = vadd.f32 0.0, %v772
        %v774 = vpop.f32.mrb[0].mxu0
        %775 = vmatprep.mubr.bf16.mxu0 %v506
        %776 = vmatmul.mubr.bf16.gmra.mrb[0].mxu0 %v505
        %v777 = vpop.f32.mrb[0].mxu0
        %v778 = vadd.f32 0.0, %v777
        %v779 = vpop.f32.mrb[0].mxu0
        %v780 = vpop.f32.mrb[0].mxu0
        %v781 = vadd.f32 0.0, %v780
        %v782 = vpop.f32.mrb[0].mxu0
        %783 = vmatprep.mubr.bf16.mxu0 %v508
        %784 = vmatmul.mubr.bf16.gmra.mrb[0].mxu0 %v507
        %v785 = vpop.f32.mrb[0].mxu0
        %v786 = vadd.f32 0.0, %v785
        %v787 = vpop.f32.mrb[0].mxu0
        %v788 = vpop.f32.mrb[0].mxu0
        %v789 = vadd.f32 0.0, %v788
        %v790 = vpop.f32.mrb[0].mxu0
        %791 = vmatprep.mubr.bf16.mxu0 %v510
        %792 = vmatmul.mubr.bf16.gmra.mrb[0].mxu0 %v509
        %v793 = vpop.f32.mrb[0].mxu0
        %v794 = vadd.f32 0.0, %v793
        %v795 = vpop.f32.mrb[0].mxu0
        %v796 = vpop.f32.mrb[0].mxu0
        %v797 = vadd.f32 0.0, %v796
        %v798 = vpop.f32.mrb[0].mxu0
        %799 = vdwg.mxu0
        %v832 = vunpack.c.l.b16 %v255
        %v833 = vunpack.c.h.b16 %v255
        %v834 = vunpack.c.l.b16 %v256
        %v835 = vunpack.c.h.b16 %v256
        %v836 = vunpack.c.l.b16 %v257
        %v837 = vunpack.c.h.b16 %v257
        %v838 = vunpack.c.l.b16 %v258
        %v839 = vunpack.c.h.b16 %v258
        %v840 = vunpack.c.l.b16 %v259
        %v841 = vunpack.c.h.b16 %v259
        %v842 = vunpack.c.l.b16 %v260
        %v843 = vunpack.c.h.b16 %v260
        %v844 = vunpack.c.l.b16 %v261
        %v845 = vunpack.c.h.b16 %v261
        %v846 = vunpack.c.l.b16 %v262
        %v847 = vunpack.c.h.b16 %v262
        %v848 = vunpack.c.l.b16 %v263
        %v849 = vunpack.c.h.b16 %v263
        %v850 = vunpack.c.l.b16 %v264
        %v851 = vunpack.c.h.b16 %v264
        %v852 = vunpack.c.l.b16 %v265
        %v853 = vunpack.c.h.b16 %v265
        %v854 = vunpack.c.l.b16 %v266
        %v855 = vunpack.c.h.b16 %v266
        %v856 = vunpack.c.l.b16 %v267
        %v857 = vunpack.c.h.b16 %v267
        %v858 = vunpack.c.l.b16 %v268
        %v859 = vunpack.c.h.b16 %v268
        %v860 = vunpack.c.l.b16 %v269
        %v861 = vunpack.c.h.b16 %v269
        %v862 = vunpack.c.l.b16 %v270
        %v863 = vunpack.c.h.b16 %v270
        %v864 = vunpack.c.l.b16 %v271
        %v865 = vunpack.c.h.b16 %v271
        %v866 = vunpack.c.l.b16 %v272
        %v867 = vunpack.c.h.b16 %v272
        %v868 = vunpack.c.l.b16 %v273
        %v869 = vunpack.c.h.b16 %v273
        %v870 = vunpack.c.l.b16 %v274
        %v871 = vunpack.c.h.b16 %v274
        %v872 = vunpack.c.l.b16 %v275
        %v873 = vunpack.c.h.b16 %v275
        %v874 = vunpack.c.l.b16 %v276
        %v875 = vunpack.c.h.b16 %v276
        %v876 = vunpack.c.l.b16 %v277
        %v877 = vunpack.c.h.b16 %v277
        %v878 = vunpack.c.l.b16 %v278
        %v879 = vunpack.c.h.b16 %v278
        %v880 = vunpack.c.l.b16 %v279
        %v881 = vunpack.c.h.b16 %v279
        %v882 = vunpack.c.l.b16 %v280
        %v883 = vunpack.c.h.b16 %v280
        %v884 = vunpack.c.l.b16 %v281
        %v885 = vunpack.c.h.b16 %v281
        %v886 = vunpack.c.l.b16 %v282
        %v887 = vunpack.c.h.b16 %v282
        %v888 = vunpack.c.l.b16 %v283
        %v889 = vunpack.c.h.b16 %v283
        %v890 = vunpack.c.l.b16 %v284
        %v891 = vunpack.c.h.b16 %v284
        %v892 = vunpack.c.l.b16 %v285
        %v893 = vunpack.c.h.b16 %v285
        %v894 = vunpack.c.l.b16 %v286
        %v895 = vunpack.c.h.b16 %v286
        %v896 = vpack.c.b16 %v834, %v832
        %v897 = vpack.c.b16 %v835, %v833
        %v898 = vpack.c.b16 %v838, %v836
        %v899 = vpack.c.b16 %v839, %v837
        %v900 = vpack.c.b16 %v842, %v840
        %v901 = vpack.c.b16 %v843, %v841
        %v902 = vpack.c.b16 %v846, %v844
        %v903 = vpack.c.b16 %v847, %v845
        %v904 = vpack.c.b16 %v850, %v848
        %v905 = vpack.c.b16 %v851, %v849
        %v906 = vpack.c.b16 %v854, %v852
        %v907 = vpack.c.b16 %v855, %v853
        %v908 = vpack.c.b16 %v858, %v856
        %v909 = vpack.c.b16 %v859, %v857
        %v910 = vpack.c.b16 %v862, %v860
        %v911 = vpack.c.b16 %v863, %v861
        %v912 = vpack.c.b16 %v866, %v864
        %v913 = vpack.c.b16 %v867, %v865
        %v914 = vpack.c.b16 %v870, %v868
        %v915 = vpack.c.b16 %v871, %v869
        %v916 = vpack.c.b16 %v874, %v872
        %v917 = vpack.c.b16 %v875, %v873
        %v918 = vpack.c.b16 %v878, %v876
        %v919 = vpack.c.b16 %v879, %v877
        %v920 = vpack.c.b16 %v882, %v880
        %v921 = vpack.c.b16 %v883, %v881
        %v922 = vpack.c.b16 %v886, %v884
        %v923 = vpack.c.b16 %v887, %v885
        %v924 = vpack.c.b16 %v890, %v888
        %v925 = vpack.c.b16 %v891, %v889
        %v926 = vpack.c.b16 %v894, %v892
        %v927 = vpack.c.b16 %v895, %v893
        %v992 = vunpack.c.l.b16 %v287
        %v993 = vunpack.c.l.b16 %v288
        %v994 = vunpack.c.l.b16 %v289
        %v995 = vunpack.c.l.b16 %v290
        %v996 = vunpack.c.l.b16 %v291
        %v997 = vunpack.c.l.b16 %v292
        %v998 = vunpack.c.l.b16 %v293
        %v999 = vunpack.c.l.b16 %v294
        %v1000 = vunpack.c.l.b16 %v295
        %v1001 = vunpack.c.l.b16 %v296
        %v1002 = vunpack.c.l.b16 %v297
        %v1003 = vunpack.c.l.b16 %v298
        %v1004 = vunpack.c.l.b16 %v299
        %v1005 = vunpack.c.l.b16 %v300
        %v1006 = vunpack.c.l.b16 %v301
        %v1007 = vunpack.c.l.b16 %v302
        %v1008 = vunpack.c.l.b16 %v303
        %v1009 = vunpack.c.l.b16 %v304
        %v1010 = vunpack.c.l.b16 %v305
        %v1011 = vunpack.c.l.b16 %v306
        %v1012 = vunpack.c.l.b16 %v307
        %v1013 = vunpack.c.l.b16 %v308
        %v1014 = vunpack.c.l.b16 %v309
        %v1015 = vunpack.c.l.b16 %v310
        %v1016 = vunpack.c.l.b16 %v311
        %v1017 = vunpack.c.l.b16 %v312
        %v1018 = vunpack.c.l.b16 %v313
        %v1019 = vunpack.c.l.b16 %v314
        %v1020 = vunpack.c.l.b16 %v315
        %v1021 = vunpack.c.l.b16 %v316
        %v1022 = vunpack.c.l.b16 %v317
        %v1023 = vunpack.c.l.b16 %v318
        %v1024 = vpack.c.b16 %v993, %v992
        %v1025 = vpack.c.b16 %v995, %v994
        %v1026 = vpack.c.b16 %v997, %v996
        %v1027 = vpack.c.b16 %v999, %v998
        %v1028 = vpack.c.b16 %v1001, %v1000
        %v1029 = vpack.c.b16 %v1003, %v1002
        %v1030 = vpack.c.b16 %v1005, %v1004
        %v1031 = vpack.c.b16 %v1007, %v1006
        %v1032 = vpack.c.b16 %v1009, %v1008
        %v1033 = vpack.c.b16 %v1011, %v1010
        %v1034 = vpack.c.b16 %v1013, %v1012
        %v1035 = vpack.c.b16 %v1015, %v1014
        %v1036 = vpack.c.b16 %v1017, %v1016
        %v1037 = vpack.c.b16 %v1019, %v1018
        %v1038 = vpack.c.b16 %v1021, %v1020
        %v1039 = vpack.c.b16 %v1023, %v1022
        %1056 = vmatprep.subr.bf16.mxu0 0
        %1057 = vmatpush1.bf16.msra.mxu0 %v1024
        %1058 = vmatprep.subr.bf16.mxu0 0
        %1059 = vmatpush1.bf16.msra.mxu0 %v1025
        %1060 = vmatprep.subr.bf16.mxu0 0
        %1061 = vmatpush1.bf16.msra.mxu0 %v1026
        %1062 = vmatprep.subr.bf16.mxu0 0
        %1063 = vmatpush1.bf16.msra.mxu0 %v1027
        %1064 = vmatprep.subr.bf16.mxu0 0
        %1065 = vmatpush1.bf16.msra.mxu0 %v1028
        %1066 = vmatprep.subr.bf16.mxu0 0
        %1067 = vmatpush1.bf16.msra.mxu0 %v1029
        %1068 = vmatprep.subr.bf16.mxu0 0
        %1069 = vmatpush1.bf16.msra.mxu0 %v1030
        %1070 = vmatprep.subr.bf16.mxu0 0
        %1071 = vmatpush1.bf16.msra.mxu0 %v1031
        %1072 = vmatprep.subr.bf16.mxu0 0
        %1073 = vmatpush1.bf16.msra.mxu0 %v1032
        %1074 = vmatprep.subr.bf16.mxu0 0
        %1075 = vmatpush1.bf16.msra.mxu0 %v1033
        %1076 = vmatprep.subr.bf16.mxu0 0
        %1077 = vmatpush1.bf16.msra.mxu0 %v1034
        %1078 = vmatprep.subr.bf16.mxu0 0
        %1079 = vmatpush1.bf16.msra.mxu0 %v1035
        %1080 = vmatprep.subr.bf16.mxu0 0
        %1081 = vmatpush1.bf16.msra.mxu0 %v1036
        %1082 = vmatprep.subr.bf16.mxu0 0
        %1083 = vmatpush1.bf16.msra.mxu0 %v1037
        %1084 = vmatprep.subr.bf16.mxu0 0
        %1085 = vmatpush1.bf16.msra.mxu0 %v1038
        %1086 = vmatprep.subr.bf16.mxu0 0
        %1087 = vmatpush1.bf16.msra.mxu0 %v1039
        %1088 = vmatprep.mubr.bf16.mxu0 %v897
        %1089 = vmatmul.mubr.bf16.gmra.mrb[0].mxu0 %v896
        %v1090 = vpop.f32.mrb[0].mxu0
        %v1091 = vadd.f32 %v674, %v1090
        %v1092 = vpop.f32.mrb[0].mxu0
        %v1093 = vpop.f32.mrb[0].mxu0
        %v1094 = vadd.f32 %v677, %v1093
        %v1095 = vpop.f32.mrb[0].mxu0
        %1096 = vmatprep.mubr.bf16.mxu0 %v899
        %1097 = vmatmul.mubr.bf16.gmra.mrb[0].mxu0 %v898
        %v1098 = vpop.f32.mrb[0].mxu0
        %v1099 = vadd.f32 %v682, %v1098
        %v1100 = vpop.f32.mrb[0].mxu0
        %v1101 = vpop.f32.mrb[0].mxu0
        %v1102 = vadd.f32 %v685, %v1101
        %v1103 = vpop.f32.mrb[0].mxu0
        %1104 = vmatprep.mubr.bf16.mxu0 %v901
        %1105 = vmatmul.mubr.bf16.gmra.mrb[0].mxu0 %v900
        %v1106 = vpop.f32.mrb[0].mxu0
        %v1107 = vadd.f32 %v690, %v1106
        %v1108 = vpop.f32.mrb[0].mxu0
        %v1109 = vpop.f32.mrb[0].mxu0
        %v1110 = vadd.f32 %v693, %v1109
        %v1111 = vpop.f32.mrb[0].mxu0
        %1112 = vmatprep.mubr.bf16.mxu0 %v903
        %1113 = vmatmul.mubr.bf16.gmra.mrb[0].mxu0 %v902
        %v1114 = vpop.f32.mrb[0].mxu0
        %v1115 = vadd.f32 %v698, %v1114
        %v1116 = vpop.f32.mrb[0].mxu0
        %v1117 = vpop.f32.mrb[0].mxu0
        %v1118 = vadd.f32 %v701, %v1117
        %v1119 = vpop.f32.mrb[0].mxu0
        %1120 = vmatprep.mubr.bf16.mxu0 %v905
        %1121 = vmatmul.mubr.bf16.gmra.mrb[0].mxu0 %v904
        %v1122 = vpop.f32.mrb[0].mxu0
        %v1123 = vadd.f32 %v706, %v1122
        %v1124 = vpop.f32.mrb[0].mxu0
        %v1125 = vpop.f32.mrb[0].mxu0
        %v1126 = vadd.f32 %v709, %v1125
        %v1127 = vpop.f32.mrb[0].mxu0
        %1128 = vmatprep.mubr.bf16.mxu0 %v907
        %1129 = vmatmul.mubr.bf16.gmra.mrb[0].mxu0 %v906
        %v1130 = vpop.f32.mrb[0].mxu0
        %v1131 = vadd.f32 %v714, %v1130
        %v1132 = vpop.f32.mrb[0].mxu0
        %v1133 = vpop.f32.mrb[0].mxu0
        %v1134 = vadd.f32 %v717, %v1133
        %v1135 = vpop.f32.mrb[0].mxu0
        %1136 = vmatprep.mubr.bf16.mxu0 %v909
        %1137 = vmatmul.mubr.bf16.gmra.mrb[0].mxu0 %v908
        %v1138 = vpop.f32.mrb[0].mxu0
        %v1139 = vadd.f32 %v722, %v1138
        %v1140 = vpop.f32.mrb[0].mxu0
        %v1141 = vpop.f32.mrb[0].mxu0
        %v1142 = vadd.f32 %v725, %v1141
        %v1143 = vpop.f32.mrb[0].mxu0
        %1144 = vmatprep.mubr.bf16.mxu0 %v911
        %1145 = vmatmul.mubr.bf16.gmra.mrb[0].mxu0 %v910
        %v1146 = vpop.f32.mrb[0].mxu0
        %v1147 = vadd.f32 %v730, %v1146
        %v1148 = vpop.f32.mrb[0].mxu0
        %v1149 = vpop.f32.mrb[0].mxu0
        %v1150 = vadd.f32 %v733, %v1149
        %v1151 = vpop.f32.mrb[0].mxu0
        %1152 = vmatprep.mubr.bf16.mxu0 %v913
        %1153 = vmatmul.mubr.bf16.gmra.mrb[0].mxu0 %v912
        %v1154 = vpop.f32.mrb[0].mxu0
        %v1155 = vadd.f32 %v738, %v1154
        %v1156 = vpop.f32.mrb[0].mxu0
        %v1157 = vpop.f32.mrb[0].mxu0
        %v1158 = vadd.f32 %v741, %v1157
        %v1159 = vpop.f32.mrb[0].mxu0
        %1160 = vmatprep.mubr.bf16.mxu0 %v915
        %1161 = vmatmul.mubr.bf16.gmra.mrb[0].mxu0 %v914
        %v1162 = vpop.f32.mrb[0].mxu0
        %v1163 = vadd.f32 %v746, %v1162
        %v1164 = vpop.f32.mrb[0].mxu0
        %v1165 = vpop.f32.mrb[0].mxu0
        %v1166 = vadd.f32 %v749, %v1165
        %v1167 = vpop.f32.mrb[0].mxu0
        %1168 = vmatprep.mubr.bf16.mxu0 %v917
        %1169 = vmatmul.mubr.bf16.gmra.mrb[0].mxu0 %v916
        %v1170 = vpop.f32.mrb[0].mxu0
        %v1171 = vadd.f32 %v754, %v1170
        %v1172 = vpop.f32.mrb[0].mxu0
        %v1173 = vpop.f32.mrb[0].mxu0
        %v1174 = vadd.f32 %v757, %v1173
        %v1175 = vpop.f32.mrb[0].mxu0
        %1176 = vmatprep.mubr.bf16.mxu0 %v919
        %1177 = vmatmul.mubr.bf16.gmra.mrb[0].mxu0 %v918
        %v1178 = vpop.f32.mrb[0].mxu0
        %v1179 = vadd.f32 %v762, %v1178
        %v1180 = vpop.f32.mrb[0].mxu0
        %v1181 = vpop.f32.mrb[0].mxu0
        %v1182 = vadd.f32 %v765, %v1181
        %v1183 = vpop.f32.mrb[0].mxu0
        %1184 = vmatprep.mubr.bf16.mxu0 %v921
        %1185 = vmatmul.mubr.bf16.gmra.mrb[0].mxu0 %v920
        %v1186 = vpop.f32.mrb[0].mxu0
        %v1187 = vadd.f32 %v770, %v1186
        %v1188 = vpop.f32.mrb[0].mxu0
        %v1189 = vpop.f32.mrb[0].mxu0
        %v1190 = vadd.f32 %v773, %v1189
        %v1191 = vpop.f32.mrb[0].mxu0
        %1192 = vmatprep.mubr.bf16.mxu0 %v923
        %1193 = vmatmul.mubr.bf16.gmra.mrb[0].mxu0 %v922
        %v1194 = vpop.f32.mrb[0].mxu0
        %v1195 = vadd.f32 %v778, %v1194
        %v1196 = vpop.f32.mrb[0].mxu0
        %v1197 = vpop.f32.mrb[0].mxu0
        %v1198 = vadd.f32 %v781, %v1197
        %v1199 = vpop.f32.mrb[0].mxu0
        %1200 = vmatprep.mubr.bf16.mxu0 %v925
        %1201 = vmatmul.mubr.bf16.gmra.mrb[0].mxu0 %v924
        %v1202 = vpop.f32.mrb[0].mxu0
        %v1203 = vadd.f32 %v786, %v1202
        %v1204 = vpop.f32.mrb[0].mxu0
        %v1205 = vpop.f32.mrb[0].mxu0
        %v1206 = vadd.f32 %v789, %v1205
        %v1207 = vpop.f32.mrb[0].mxu0
        %1208 = vmatprep.mubr.bf16.mxu0 %v927
        %1209 = vmatmul.mubr.bf16.gmra.mrb[0].mxu0 %v926
        %v1210 = vpop.f32.mrb[0].mxu0
        %v1211 = vadd.f32 %v794, %v1210
        %v1212 = vpop.f32.mrb[0].mxu0
        %v1213 = vpop.f32.mrb[0].mxu0
        %v1214 = vadd.f32 %v797, %v1213
        %v1215 = vpop.f32.mrb[0].mxu0
        %1216 = vdwg.mxu0
        %v1217 = vld [vmem:[%s4] sm:$0x1]
        %v1219 = vlaneseq
        %v1220 = vshrl.u32 %v1219, 7
        %v1221 = vsub.s32 0, %v1220
        %v1222 = vrot.slane %v1217, %v1221
        %v1224 = vadd.f32 %v1091, %v1222
        %v1225 = vadd.f32 %v1094, %v1222
        %v1226 = vadd.f32 %v1099, %v1222
        %v1227 = vadd.f32 %v1102, %v1222
        %v1228 = vadd.f32 %v1107, %v1222
        %v1229 = vadd.f32 %v1110, %v1222
        %v1230 = vadd.f32 %v1115, %v1222
        %v1231 = vadd.f32 %v1118, %v1222
        %v1232 = vadd.f32 %v1123, %v1222
        %v1233 = vadd.f32 %v1126, %v1222
        %v1234 = vadd.f32 %v1131, %v1222
        %v1235 = vadd.f32 %v1134, %v1222
        %v1236 = vadd.f32 %v1139, %v1222
        %v1237 = vadd.f32 %v1142, %v1222
        %v1238 = vadd.f32 %v1147, %v1222
        %v1239 = vadd.f32 %v1150, %v1222
        %v1240 = vadd.f32 %v1155, %v1222
        %v1241 = vadd.f32 %v1158, %v1222
        %v1242 = vadd.f32 %v1163, %v1222
        %v1243 = vadd.f32 %v1166, %v1222
        %v1244 = vadd.f32 %v1171, %v1222
        %v1245 = vadd.f32 %v1174, %v1222
        %v1246 = vadd.f32 %v1179, %v1222
        %v1247 = vadd.f32 %v1182, %v1222
        %v1248 = vadd.f32 %v1187, %v1222
        %v1249 = vadd.f32 %v1190, %v1222
        %v1250 = vadd.f32 %v1195, %v1222
        %v1251 = vadd.f32 %v1198, %v1222
        %v1252 = vadd.f32 %v1203, %v1222
        %v1253 = vadd.f32 %v1206, %v1222
        %v1254 = vadd.f32 %v1211, %v1222
        %v1255 = vadd.f32 %v1214, %v1222
        %v1256 = vmax.f32 %v1224, 0.0
        %v1257 = vmax.f32 %v1225, 0.0
        %v1258 = vmax.f32 %v1226, 0.0
        %v1259 = vmax.f32 %v1227, 0.0
        %v1260 = vmax.f32 %v1228, 0.0
        %v1261 = vmax.f32 %v1229, 0.0
        %v1262 = vmax.f32 %v1230, 0.0
        %v1263 = vmax.f32 %v1231, 0.0
        %v1264 = vmax.f32 %v1232, 0.0
        %v1265 = vmax.f32 %v1233, 0.0
        %v1266 = vmax.f32 %v1234, 0.0
        %v1267 = vmax.f32 %v1235, 0.0
        %v1268 = vmax.f32 %v1236, 0.0
        %v1269 = vmax.f32 %v1237, 0.0
        %v1270 = vmax.f32 %v1238, 0.0
        %v1271 = vmax.f32 %v1239, 0.0
        %v1272 = vmax.f32 %v1240, 0.0
        %v1273 = vmax.f32 %v1241, 0.0
        %v1274 = vmax.f32 %v1242, 0.0
        %v1275 = vmax.f32 %v1243, 0.0
        %v1276 = vmax.f32 %v1244, 0.0
        %v1277 = vmax.f32 %v1245, 0.0
        %v1278 = vmax.f32 %v1246, 0.0
        %v1279 = vmax.f32 %v1247, 0.0
        %v1280 = vmax.f32 %v1248, 0.0
        %v1281 = vmax.f32 %v1249, 0.0
        %v1282 = vmax.f32 %v1250, 0.0
        %v1283 = vmax.f32 %v1251, 0.0
        %v1284 = vmax.f32 %v1252, 0.0
        %v1285 = vmax.f32 %v1253, 0.0
        %v1286 = vmax.f32 %v1254, 0.0
        %v1287 = vmax.f32 %v1255, 0.0
        %vm1288 = vcmask 523264
        %1289 = vst.msk [vmem:[%s238] sm:$0xff] %vm1288, %v1256
        %1290 = vst.msk [vmem:[%s238 + $0x8] sm:$0xff] %vm1288, %v1257
        %1291 = vst.msk [vmem:[%s238 + $0x10] sm:$0xff] %vm1288, %v1258
        %1292 = vst.msk [vmem:[%s238 + $0x18] sm:$0xff] %vm1288, %v1259
        %1293 = vst.msk [vmem:[%s238 + $0x20] sm:$0xff] %vm1288, %v1260
        %1294 = vst.msk [vmem:[%s238 + $0x28] sm:$0xff] %vm1288, %v1261
        %1295 = vst.msk [vmem:[%s238 + $0x30] sm:$0xff] %vm1288, %v1262
        %1296 = vst.msk [vmem:[%s238 + $0x38] sm:$0xff] %vm1288, %v1263
        %1297 = vst.msk [vmem:[%s238 + $0x40] sm:$0xff] %vm1288, %v1264
        %1298 = vst.msk [vmem:[%s238 + $0x48] sm:$0xff] %vm1288, %v1265
        %1299 = vst.msk [vmem:[%s238 + $0x50] sm:$0xff] %vm1288, %v1266
        %1300 = vst.msk [vmem:[%s238 + $0x58] sm:$0xff] %vm1288, %v1267
        %1301 = vst.msk [vmem:[%s238 + $0x60] sm:$0xff] %vm1288, %v1268
        %1302 = vst.msk [vmem:[%s238 + $0x68] sm:$0xff] %vm1288, %v1269
        %1303 = vst.msk [vmem:[%s238 + $0x70] sm:$0xff] %vm1288, %v1270
        %1304 = vst.msk [vmem:[%s238 + $0x78] sm:$0xff] %vm1288, %v1271
        %1305 = vst.msk [vmem:[%s238 + $0x80] sm:$0xff] %vm1288, %v1272
        %1306 = vst.msk [vmem:[%s238 + $0x88] sm:$0xff] %vm1288, %v1273
        %1307 = vst.msk [vmem:[%s238 + $0x90] sm:$0xff] %vm1288, %v1274
        %1308 = vst.msk [vmem:[%s238 + $0x98] sm:$0xff] %vm1288, %v1275
        %1309 = vst.msk [vmem:[%s238 + $0xa0] sm:$0xff] %vm1288, %v1276
        %1310 = vst.msk [vmem:[%s238 + $0xa8] sm:$0xff] %vm1288, %v1277
        %1311 = vst.msk [vmem:[%s238 + $0xb0] sm:$0xff] %vm1288, %v1278
        %1312 = vst.msk [vmem:[%s238 + $0xb8] sm:$0xff] %vm1288, %v1279
        %1313 = vst.msk [vmem:[%s238 + $0xc0] sm:$0xff] %vm1288, %v1280
        %1314 = vst.msk [vmem:[%s238 + $0xc8] sm:$0xff] %vm1288, %v1281
        %1315 = vst.msk [vmem:[%s238 + $0xd0] sm:$0xff] %vm1288, %v1282
        %1316 = vst.msk [vmem:[%s238 + $0xd8] sm:$0xff] %vm1288, %v1283
        %1317 = vst.msk [vmem:[%s238 + $0xe0] sm:$0xff] %vm1288, %v1284
        %1318 = vst.msk [vmem:[%s238 + $0xe8] sm:$0xff] %vm1288, %v1285
        %1319 = vst.msk [vmem:[%s238 + $0xf0] sm:$0xff] %vm1288, %v1286
        %1320 = vst.msk [vmem:[%s238 + $0xf8] sm:$0xff] %vm1288, %v1287
        %s1321 = sand.u32 %s142, 1
        %s1322 = scalar_lea.sflag [#allocation3], %s1321
        %s1323 = sand.u32 %s142, 1
        %s1324 = smul.addr %s1323, 256
        %s1325 = scalar_lea.vmem [#allocation2], %s1324
        // Predicated region
        $region41: #{forward.1} parent=39 // pred_check
          %p1326 = pneg %p152
        $region42: #{forward.1} parent=39 // pred_check_branch
          %1328 = sbr.rel (%p1326) target = $region44
        $region43: #{forward.1} parent=39 // pred_region
          %s1329 = smul.u32 32, %s19
          %s1331 = ssub.s32 4096, 4096
          %1332 = vsyncadd %s1322, %s1331
          %s1333 = smul.addr %s1329, 128
          %s1334 = scalar_lea.hbm %s5, %s1333
          %s1335 = sshll.u32 %s1325, 4
          %s1336 = int_to_ptr.vmem [resolvable:$true] %s1335
          %1341 = dma.vmem_to_hbm [thread:$0]  %s1336, 4096, %s1334, %s1322, 128, 128, 8
        $region44: #{forward.1} parent=39 // pred_fallthru
          _
      $region40: #{forward.1} parent=5 // pred_fallthru
        _
      %p1342 = scmp.le.s32.totalorder 2, %s14
      // Predicated region
      $region45: #{forward.1} parent=5 // pred_check
        %p1343 = pneg %p1342
      $region46: #{forward.1} parent=5 // pred_check_branch
        %1345 = sbr.rel (%p1343) target = $region48
      $region47: #{forward.1} parent=5 // pred_region
        %s1346 = ssub.s32 %s14, 2
        // Predicated region
        $region49: #{forward.1} parent=47 // pred_check
          %p1347 = pneg %p158
        $region50: #{forward.1} parent=47 // pred_check_branch
          %1349 = sbr.rel (%p1347) target = $region52
        $region51: #{forward.1} parent=47 // pred_region
          %s1350 = sand.u32 %s143, 1
          %s1351 = scalar_lea.sflag [#allocation3], %s1350
          %s1352 = sand.u32 %s143, 1
          %s1353 = smul.addr %s1352, 256
          %s1354 = scalar_lea.vmem [#allocation2], %s1353
          %1355 = dma.done %s1351, 4096
        $region52: #{forward.1} parent=47 // pred_fallthru
          _
      $region48: #{forward.1} parent=5 // pred_fallthru
        _
    $region6: #{forward.1} parent=1 // loop_footer
      %s18 = sadd.s32 1, %s14
    $region7: #{forward.1} parent=1 // loop_footer_branch
      %13 = sbr.rel target = $region3
    $region8: #{forward.1} parent=1 // loop_exit
      _
    %1356 = vsyncpa [#allocation3], 1
    %s1357 = scalar_lea.sflag [#allocation3], 1
    %1358 = vsyncpa %s1357, 1

</llo_original>
